<compile_context>
chip_gen: v6e
topology: v6e:2x2x1
jax: 0.10.0
libtpu: 0.0.40
codegen_flags: <defaults>
</compile_context>

<pallas_src>
import jax
import jax.numpy as jnp
import numpy as np
from jax.experimental import pallas as pl
from jax.experimental.pallas import tpu as pltpu


def _round_up(x, m):
    return ((x + m - 1) // m) * m


def _pad2(a, rows, cols):
    pr, pc = rows - a.shape[0], cols - a.shape[1]
    if pr == 0 and pc == 0:
        return a
    return jnp.pad(a, ((0, pr), (0, pc)))


def _encoder_kernel(w1_ref, x_ref, b1_ref, w2_ref, b2_ref, h2t_ref, acc_ref):
    """Accumulate W1 @ x over node tiles; finalize both Linear+ReLU stages (transposed)."""
    k = pl.program_id(0)

    @pl.when(k == 0)
    def _():
        acc_ref[...] = jnp.zeros_like(acc_ref)

    # (E, tn) @ (tn, F) -> (E, F); bf16 operands, f32 accumulation on the MXU.
    acc_ref[...] += jnp.dot(w1_ref[...], x_ref[...],
                            preferred_element_type=jnp.float32)

    @pl.when(k == pl.num_programs(0) - 1)
    def _():
        # f32 epilogue (bias + ReLU) -- keep in f32 (v5e has no bf16 VPU).
        h1t = jnp.maximum(acc_ref[...] + b1_ref[...], 0.0)            # (E, F)
        # TODO(synk): F.dropout with p > 0 (training-mode RNG) not implemented;
        # forward is run with dropout = 0.0, so dropout is the identity.
        h2t = jnp.dot(w2_ref[...], h1t,
                      preferred_element_type=jnp.float32) + b2_ref[...]   # (D, F)
        h2t_ref[...] = jnp.maximum(h2t, 0.0).astype(h2t_ref.dtype)


def _decoder_kernel(se_ref, h2t_ref, out_ref):
    """Row tile of out = struct_embed_tile (tm,D) @ h2t (D,F): plain MXU matmul."""
    out_ref[...] = jnp.dot(se_ref[...], h2t_ref[...],
                           preferred_element_type=jnp.float32).astype(out_ref.dtype)


def attribute_ae_forward(x, struct_embed, params, *, tn=256, tm=256,
                         compute_dtype=jnp.bfloat16):
    """AttributeAE forward.

    x            : (N, F)  node features (N = in_dim = number of nodes)
    struct_embed : (N, D)  node embeddings from the structure AE
    params["w1"] : (E, N)  raw dense1.weight     params["b1"]: (E,)
    params["w2"] : (D, E)  raw dense2.weight     params["b2"]: (D,)
    returns      : (N, F)  reconstructed node attributes (float32)
    """
    f32 = jnp.float32
    N, F = x.shape
    E, N_w = params["w1"].shape
    D, E_w = params["w2"].shape
    assert N_w == N and E_w == E
    assert struct_embed.shape == (N, D)

    # Lane-dense feature axis; clamp tiles for small graphs (stay multiples of 128).
    F_pad = _round_up(F, 128)
    tn = min(tn, _round_up(N, 128))
    tm = min(tm, _round_up(N, 128))
    n_pad_enc = _round_up(N, tn)
    n_pad_dec = _round_up(N, tm)

    # Small residents stay f32; the streamed MXU operands are cast to bf16 (halves
    # DMA bytes / VMEM, 2x+ MXU rate on v6e/v7x) with zero-padding of N / F.
    b1 = params["b1"].reshape(E, 1).astype(f32)
    b2 = params["b2"].reshape(D, 1).astype(f32)
    w2 = params["w2"].astype(f32)
    x_c = _pad2(x.astype(compute_dtype), n_pad_enc, F_pad)
    w1_c = _pad2(params["w1"].astype(compute_dtype), E, n_pad_enc)
    se_c = _pad2(struct_embed.astype(compute_dtype), n_pad_dec, D)

    csize = jnp.dtype(compute_dtype).itemsize

    # ---- encoder: h2t = relu(W2 @ relu(W1 @ x + b1) + b2)  -> (D, F_pad) -----------
    enc_block_bytes = (2 * E * tn * csize            # W1 node tiles (double-buffered)
                       + 2 * tn * F_pad * csize      # x node tiles (double-buffered)
                       + 2 * (E + D * E + D) * 4     # b1, W2, b2 residents
                       + 2 * D * F_pad * csize       # h2t output buffers
                       + E * F_pad * 4)              # f32 accumulator scratch
    enc_vmem = int(min(64 << 20, max(32 << 20, 1.5 * enc_block_bytes)))

    h2t = pl.pallas_call(
        _encoder_kernel,
        out_shape=jax.ShapeDtypeStruct((D, F_pad), compute_dtype),
        grid_spec=pltpu.PrefetchScalarGridSpec(
            num_scalar_prefetch=0,
            grid=(n_pad_enc // tn,),
            in_specs=[
                pl.BlockSpec((E, tn), lambda k: (0, k)),       # W1 node tile
                pl.BlockSpec((tn, F_pad), lambda k: (k, 0)),   # x node tile
                pl.BlockSpec((E, 1), lambda k: (0, 0)),        # b1 (resident)
                pl.BlockSpec((D, E), lambda k: (0, 0)),        # W2 (resident)
                pl.BlockSpec((D, 1), lambda k: (0, 0)),        # b2 (resident)
            ],
            out_specs=pl.BlockSpec((D, F_pad), lambda k: (0, 0)),
            scratch_shapes=[pltpu.VMEM((E, F_pad), jnp.float32)],
        ),
        compiler_params=pltpu.CompilerParams(
            dimension_semantics=("arbitrary",),               # reduction over node tiles
            vmem_limit_bytes=enc_vmem),
    )(w1_c, x_c, b1, w2, b2)

    # ---- decoder: out = struct_embed @ h2t  -> (N, F) --------------------------------
    dec_block_bytes = (2 * tm * D * csize            # struct_embed row tiles
                       + 2 * D * F_pad * csize       # resident h2t (tiny; double-buffered)
                       + 2 * tm * F_pad * 4)         # f32 output buffers
    dec_vmem = int(min(64 << 20, max(32 << 20, 1.5 * dec_block_bytes)))

    out = pl.pallas_call(
        _decoder_kernel,
        out_shape=jax.ShapeDtypeStruct((n_pad_dec, F_pad), jnp.float32),
        grid_spec=pltpu.PrefetchScalarGridSpec(
            num_scalar_prefetch=0,
            grid=(n_pad_dec // tm,),
            in_specs=[
                pl.BlockSpec((tm, D), lambda i: (i, 0)),       # struct_embed rows
                pl.BlockSpec((D, F_pad), lambda i: (0, 0)),    # h2t (resident)
            ],
            out_specs=pl.BlockSpec((tm, F_pad), lambda i: (i, 0)),
        ),
        compiler_params=pltpu.CompilerParams(
            dimension_semantics=("parallel",),                 # megacore-shard row tiles
            vmem_limit_bytes=dec_vmem),
    )(se_c, h2t)

    return out[:N, :F]


def _reference(x, struct_embed, p, compute_dtype):
    """Pure-JAX reference mirroring the PyTorch forward (dropout = 0), with the same
    bf16 rounding of the MXU operands as the kernel (f32 accumulation)."""
    cd = lambda a: a.astype(compute_dtype).astype(jnp.float32)
    h1t = jnp.maximum(cd(p["w1"]) @ cd(x) + p["b1"].reshape(-1, 1), 0.0)   # (E, F)
    h2t = jnp.maximum(p["w2"] @ h1t + p["b2"].reshape(-1, 1), 0.0)         # (D, F)
    return cd(struct_embed) @ cd(h2t)                                      # (N, F)


if __name__ == "__main__":
    # small shapes consistent with the module
    N = 128      # in_dim: number of nodes
    F = 128      # number of node attributes (features)
    E = 64       # embed_dim
    D = 32       # out_dim (shared with the structure AE embedding)
    dropout = 0.0  # deterministic (identity) dropout

    key = jax.random.PRNGKey(0)
    k_x, k_se, k_w1, k_w2, k_b1, k_b2 = jax.random.split(key, 6)

    x = jax.random.normal(k_x, (N, F), dtype=jnp.float32)
    struct_embed = jax.random.normal(k_se, (N, D), dtype=jnp.float32)

    # dense1.weight: (E, N), dense2.weight: (D, E) -- raw PyTorch layout, no transposes.
    bound1 = float(np.sqrt(6.0 / (N + E)))
    w1 = jax.random.uniform(k_w1, (E, N), jnp.float32, -bound1, bound1)
    bound2 = float(np.sqrt(6.0 / (E + D)))
    w2 = jax.random.uniform(k_w2, (D, E), jnp.float32, -bound2, bound2)
    # init_weights zeroes the biases; use small nonzero ones here to exercise the bias path.
    b1 = 0.1 * jax.random.normal(k_b1, (E,), dtype=jnp.float32)
    b2 = 0.1 * jax.random.normal(k_b2, (D,), dtype=jnp.float32)

    params = dict(w1=w1, b1=b1, w2=w2, b2=b2)

    out = attribute_ae_forward(x, struct_embed, params)
    jax.block_until_ready(out)

    out_ref = _reference(x, struct_embed, params, jnp.bfloat16)
    np.testing.assert_allclose(np.asarray(out), np.asarray(out_ref),
                               rtol=1e-2, atol=1e-2)

    print("KERNEL_OK")
</pallas_src>

<mosaic_0001>
module attributes {stable_mosaic.version = 11 : i64} {
  func.func @_encoder_kernel(%arg0: i32, %arg1: memref<64x128xbf16, #tpu.memory_space<vmem>>, %arg2: memref<128x128xbf16, #tpu.memory_space<vmem>>, %arg3: memref<64x1xf32, #tpu.memory_space<vmem>>, %arg4: memref<32x64xf32, #tpu.memory_space<vmem>>, %arg5: memref<32x1xf32, #tpu.memory_space<vmem>>, %arg6: memref<32x128xbf16, #tpu.memory_space<vmem>>, %arg7: memref<64x128xf32, #tpu.memory_space<vmem>>) attributes {dimension_semantics = [#tpu.dimension_semantics<arbitrary>], iteration_bounds = array<i64: 1>, scalar_prefetch = 0 : i64, scratch_operands = 1 : i64, tpu.core_type = #tpu.core_type<tc>, window_params = [{transform_indices = @transform_0, window_bounds = array<i64: 64, 128>}, {transform_indices = @transform_1, window_bounds = array<i64: 128, 128>}, {pipeline_mode = #tpu.pipeline_mode<synchronous>, transform_indices = @transform_2, window_bounds = array<i64: 64, 1>}, {pipeline_mode = #tpu.pipeline_mode<synchronous>, transform_indices = @transform_3, window_bounds = array<i64: 32, 64>}, {pipeline_mode = #tpu.pipeline_mode<synchronous>, transform_indices = @transform_4, window_bounds = array<i64: 32, 1>}, {pipeline_mode = #tpu.pipeline_mode<synchronous>, transform_indices = @transform_5, window_bounds = array<i64: 32, 128>}]} {
    %c0_i32 = arith.constant 0 : i32
    %0 = arith.cmpi eq, %arg0, %c0_i32 : i32
    %1 = arith.extui %0 : i1 to i32
    %c0_i32_0 = arith.constant 0 : i32
    %2 = arith.cmpi ne, %1, %c0_i32_0 : i32
    scf.if %2 {
      %cst_10 = arith.constant 0.000000e+00 : f32
      %12 = vector.broadcast %cst_10 : f32 to vector<64x128xf32>
      %c0_11 = arith.constant 0 : index
      %c0_12 = arith.constant 0 : index
      %13 = vector.load %arg7[%c0_11, %c0_12] : memref<64x128xf32, #tpu.memory_space<vmem>>, vector<64x128xf32>
      tpu.vector_store %arg7[%c0_11, %c0_12], %12 {strides = array<i32>} : memref<64x128xf32, #tpu.memory_space<vmem>>, vector<64x128xf32>,
    } else {
    }
    %c0 = arith.constant 0 : index
    %c0_1 = arith.constant 0 : index
    %3 = vector.load %arg7[%c0, %c0_1] : memref<64x128xf32, #tpu.memory_space<vmem>>, vector<64x128xf32>
    %c0_2 = arith.constant 0 : index
    %c0_3 = arith.constant 0 : index
    %4 = vector.load %arg1[%c0_2, %c0_3] : memref<64x128xbf16, #tpu.memory_space<vmem>>, vector<64x128xbf16>
    %c0_4 = arith.constant 0 : index
    %c0_5 = arith.constant 0 : index
    %5 = vector.load %arg2[%c0_4, %c0_5] : memref<128x128xbf16, #tpu.memory_space<vmem>>, vector<128x128xbf16>
    %cst = arith.constant dense<0.000000e+00> : vector<64x128xf32>
    %6 = tpu.matmul %4, %5, %cst {dimension_numbers = #tpu.dot_dimension_numbers<[1], [0], [0], [1], [0, 0, 1, 1], [], []>} : vector<64x128xbf16>, vector<128x128xbf16>, vector<64x128xf32> -> vector<64x128xf32>
    %7 = arith.addf %3, %6 : vector<64x128xf32>
    %c0_6 = arith.constant 0 : index
    %c0_7 = arith.constant 0 : index
    %8 = vector.load %arg7[%c0_6, %c0_7] : memref<64x128xf32, #tpu.memory_space<vmem>>, vector<64x128xf32>
    tpu.vector_store %arg7[%c0_6, %c0_7], %7 {strides = array<i32>} : memref<64x128xf32, #tpu.memory_space<vmem>>, vector<64x128xf32>,
    %c0_i32_8 = arith.constant 0 : i32
    %9 = arith.cmpi eq, %arg0, %c0_i32_8 : i32
    %10 = arith.extui %9 : i1 to i32
    %c0_i32_9 = arith.constant 0 : i32
    %11 = arith.cmpi ne, %10, %c0_i32_9 : i32
    scf.if %11 {
      %c0_10 = arith.constant 0 : index
      %c0_11 = arith.constant 0 : index
      %12 = vector.load %arg7[%c0_10, %c0_11] : memref<64x128xf32, #tpu.memory_space<vmem>>, vector<64x128xf32>
      %c0_12 = arith.constant 0 : index
      %c0_13 = arith.constant 0 : index
      %13 = vector.load %arg3[%c0_12, %c0_13] : memref<64x1xf32, #tpu.memory_space<vmem>>, vector<64x1xf32>
      %14 = vector.broadcast %13 : vector<64x1xf32> to vector<64x128xf32>
      %15 = arith.addf %12, %14 : vector<64x128xf32>
      %cst_14 = arith.constant 0.000000e+00 : f32
      %16 = vector.broadcast %cst_14 : f32 to vector<64x128xf32>
      %17 = arith.maximumf %15, %16 : vector<64x128xf32>
      %c0_15 = arith.constant 0 : index
      %c0_16 = arith.constant 0 : index
      %18 = vector.load %arg4[%c0_15, %c0_16] : memref<32x64xf32, #tpu.memory_space<vmem>>, vector<32x64xf32>
      %cst_17 = arith.constant dense<0.000000e+00> : vector<32x128xf32>
      %19 = tpu.matmul %18, %17, %cst_17 {dimension_numbers = #tpu.dot_dimension_numbers<[1], [0], [0], [1], [0, 0, 1, 1], [], []>} : vector<32x64xf32>, vector<64x128xf32>, vector<32x128xf32> -> vector<32x128xf32>
      %c0_18 = arith.constant 0 : index
      %c0_19 = arith.constant 0 : index
      %20 = vector.load %arg5[%c0_18, %c0_19] : memref<32x1xf32, #tpu.memory_space<vmem>>, vector<32x1xf32>
      %21 = vector.broadcast %20 : vector<32x1xf32> to vector<32x128xf32>
      %22 = arith.addf %19, %21 : vector<32x128xf32>
      %cst_20 = arith.constant 0.000000e+00 : f32
      %23 = vector.broadcast %cst_20 : f32 to vector<32x128xf32>
      %24 = arith.maximumf %22, %23 : vector<32x128xf32>
      %25 = arith.truncf %24 : vector<32x128xf32> to vector<32x128xbf16>
      %c0_21 = arith.constant 0 : index
      %c0_22 = arith.constant 0 : index
      %26 = vector.load %arg6[%c0_21, %c0_22] : memref<32x128xbf16, #tpu.memory_space<vmem>>, vector<32x128xbf16>
      tpu.vector_store %arg6[%c0_21, %c0_22], %25 {strides = array<i32>} : memref<32x128xbf16, #tpu.memory_space<vmem>>, vector<32x128xbf16>,
    } else {
    }
    return
  }
  func.func @transform_0(%arg0: i32) -> (i32, i32) {
    %c0_i32 = arith.constant 0 : i32
    %c0_i32_0 = arith.constant 0 : i32
    return %c0_i32, %arg0 : i32, i32
  }
  func.func @transform_1(%arg0: i32) -> (i32, i32) {
    %c0_i32 = arith.constant 0 : i32
    %c0_i32_0 = arith.constant 0 : i32
    return %arg0, %c0_i32 : i32, i32
  }
  func.func @transform_2(%arg0: i32) -> (i32, i32) {
    %c0_i32 = arith.constant 0 : i32
    %c0_i32_0 = arith.constant 0 : i32
    %c0_i32_1 = arith.constant 0 : i32
    return %c0_i32, %c0_i32_0 : i32, i32
  }
  func.func @transform_3(%arg0: i32) -> (i32, i32) {
    %c0_i32 = arith.constant 0 : i32
    %c0_i32_0 = arith.constant 0 : i32
    %c0_i32_1 = arith.constant 0 : i32
    return %c0_i32, %c0_i32_0 : i32, i32
  }
  func.func @transform_4(%arg0: i32) -> (i32, i32) {
    %c0_i32 = arith.constant 0 : i32
    %c0_i32_0 = arith.constant 0 : i32
    %c0_i32_1 = arith.constant 0 : i32
    return %c0_i32, %c0_i32_0 : i32, i32
  }
  func.func @transform_5(%arg0: i32) -> (i32, i32) {
    %c0_i32 = arith.constant 0 : i32
    %c0_i32_0 = arith.constant 0 : i32
    %c0_i32_1 = arith.constant 0 : i32
    return %c0_i32, %c0_i32_0 : i32, i32
  }
}

</mosaic_0001>

<llo_original>
// kernel: tpu_custom_call.1
$region0: #{tpu_custom_call.1}
  #allocation0 [shape = 'u32[]', space=smem, size = 0x4, offset = 0x4, fixed_abs, tag = 'smem constant byte address 0x4 - core index']
  #allocation1 [shape = 'u32[144,128]{1,0:T(1,128)}', space=vmem, size = 0x12000, scoped, tag = 'internal scratch']
  #allocation2 [shape = 'f32[64,128]{1,0:T(8,128)}', space=vmem, size = 0x8000, scoped, tag = 'scratch operand']
  %s0 = inlined_call_operand.vmem [shape: bf16[64,128], index: 0, kind: input, shape index: {}]
  %s1 = inlined_call_operand.vmem [shape: bf16[128,128], index: 1, kind: input, shape index: {}]
  %s2 = inlined_call_operand.vmem [shape: f32[64,1], index: 2, kind: input, shape index: {}]
  %s3 = inlined_call_operand.hbm [shape: f32[32,64], index: 3, kind: input, shape index: {}]
  %s4 = inlined_call_operand.vmem [shape: f32[32,1], index: 4, kind: input, shape index: {}]
  %s5 = inlined_call_operand.hbm [shape: bf16[32,128], index: 5, kind: output, shape index: {}]
  %s6 = sld [smem:[#allocation0]]
  $region42: #{tpu_custom_call.1} parent=0
    _
  %s8 = ssub.s32 1, %s6
  %s9 = scalar_select 0, %s8, %s6
  $region1: #{tpu_custom_call.1} parent=0
    #allocation3 [shape = 'u8[16384]{0}', space=vmem, size = 0x4000, scoped, tag = 'input window, operand 3, single buffered']
    #allocation4 [shape = 's32[1]{0}', space=sflag, size = 0x4, scoped, tag = 'scoped memory for tpu_custom_call.1']
    #allocation5 [shape = 's32[1]{0}', space=sflag, size = 0x4, scoped, tag = 'scoped memory for tpu_custom_call.1']
    #allocation6 [shape = 'u8[8192]{0}', space=vmem, size = 0x2000, scoped, tag = 'output window, operand 0, single buffered']
    %10 = vsyncpa [#allocation4], 0
    %11 = vsyncpa [#allocation5], 0
    // Predicated region
    $region2: #{tpu_custom_call.1} parent=1 // pred_check
      _
    $region3: #{tpu_custom_call.1} parent=1 // pred_check_branch
      %13 = sbr.rel (0) target = $region5
    $region4: #{tpu_custom_call.1} parent=1 // pred_region
      _
    $region5: #{tpu_custom_call.1} parent=1 // pred_fallthru
      _
    // Predicated region
    $region6: #{tpu_custom_call.1} parent=1 // pred_check
      _
    $region7: #{tpu_custom_call.1} parent=1 // pred_check_branch
      %15 = sbr.rel (0) target = $region9
    $region8: #{tpu_custom_call.1} parent=1 // pred_region
      _
    $region9: #{tpu_custom_call.1} parent=1 // pred_fallthru
      _
    // Predicated region
    $region10: #{tpu_custom_call.1} parent=1 // pred_check
      _
    $region11: #{tpu_custom_call.1} parent=1 // pred_check_branch
      %17 = sbr.rel (0) target = $region13
    $region12: #{tpu_custom_call.1} parent=1 // pred_region
      _
    $region13: #{tpu_custom_call.1} parent=1 // pred_fallthru
      _
    // Predicated region
    $region14: #{tpu_custom_call.1} parent=1 // pred_check
      _
    $region15: #{tpu_custom_call.1} parent=1 // pred_check_branch
      %19 = sbr.rel (0) target = $region17
    $region16: #{tpu_custom_call.1} parent=1 // pred_region
      %s21 = ssub.s32 512, 512
      %22 = vsyncadd [#allocation4], %s21
      %s23 = sshll.u32 [#allocation3], 4
      %s24 = int_to_ptr.vmem [resolvable:$true] %s23
      %29 = dma.hbm_to_vmem [thread:$0]  %s3, 512, %s24, [#allocation4], 128, 128, 8
    $region17: #{tpu_custom_call.1} parent=1 // pred_fallthru
      _
    // Predicated region
    $region18: #{tpu_custom_call.1} parent=1 // pred_check
      _
    $region19: #{tpu_custom_call.1} parent=1 // pred_check_branch
      %31 = sbr.rel (0) target = $region21
    $region20: #{tpu_custom_call.1} parent=1 // pred_region
      _
    $region21: #{tpu_custom_call.1} parent=1 // pred_fallthru
      _
    // Predicated region
    $region22: #{tpu_custom_call.1} parent=1 // pred_check
      _
    $region23: #{tpu_custom_call.1} parent=1 // pred_check_branch
      %33 = sbr.rel (0) target = $region25
    $region24: #{tpu_custom_call.1} parent=1 // pred_region
      %34 = dma.done [#allocation4], 512
    $region25: #{tpu_custom_call.1} parent=1 // pred_fallthru
      _
    %p36 = scmp.eq.s32.totalorder 0, 0
    // Predicated region
    $region26: #{tpu_custom_call.1} parent=1 // pred_check
      %p37 = pneg %p36
    $region27: #{tpu_custom_call.1} parent=1 // pred_check_branch
      %39 = sbr.rel (%p37) target = $region29
    $region28: #{tpu_custom_call.1} parent=1 // pred_region
      %40 = vst [vmem:[#allocation2] sm:$0xff] 0.0
      %41 = vst [vmem:[#allocation2 + $0x8] sm:$0xff] 0.0
      %42 = vst [vmem:[#allocation2 + $0x10] sm:$0xff] 0.0
      %43 = vst [vmem:[#allocation2 + $0x18] sm:$0xff] 0.0
      %44 = vst [vmem:[#allocation2 + $0x20] sm:$0xff] 0.0
      %45 = vst [vmem:[#allocation2 + $0x28] sm:$0xff] 0.0
      %46 = vst [vmem:[#allocation2 + $0x30] sm:$0xff] 0.0
      %47 = vst [vmem:[#allocation2 + $0x38] sm:$0xff] 0.0
    $region29: #{tpu_custom_call.1} parent=1 // pred_fallthru
      _
    %v48 = vld [vmem:[#allocation2] sm:$0xff]
    %v49 = vld [vmem:[#allocation2 + $0x8] sm:$0xff]
    %v50 = vld [vmem:[#allocation2 + $0x10] sm:$0xff]
    %v51 = vld [vmem:[#allocation2 + $0x18] sm:$0xff]
    %v52 = vld [vmem:[#allocation2 + $0x20] sm:$0xff]
    %v53 = vld [vmem:[#allocation2 + $0x28] sm:$0xff]
    %v54 = vld [vmem:[#allocation2 + $0x30] sm:$0xff]
    %v55 = vld [vmem:[#allocation2 + $0x38] sm:$0xff]
    %v56 = vld [vmem:[%s0] sm:$0xf]
    %v57 = vld [vmem:[%s0 + $0x4] sm:$0xf]
    %v58 = vld [vmem:[%s0 + $0x8] sm:$0xf]
    %v59 = vld [vmem:[%s0 + $0xc] sm:$0xf]
    %v60 = vld [vmem:[%s0 + $0x10] sm:$0xf]
    %v61 = vld [vmem:[%s0 + $0x14] sm:$0xf]
    %v62 = vld [vmem:[%s0 + $0x18] sm:$0xf]
    %v63 = vld [vmem:[%s0 + $0x1c] sm:$0xf]
    %v64 = vld [vmem:[%s1] sm:$0xf]
    %v65 = vld [vmem:[%s1 + $0x4] sm:$0xf]
    %v66 = vld [vmem:[%s1 + $0x8] sm:$0xf]
    %v67 = vld [vmem:[%s1 + $0xc] sm:$0xf]
    %v68 = vld [vmem:[%s1 + $0x10] sm:$0xf]
    %v69 = vld [vmem:[%s1 + $0x14] sm:$0xf]
    %v70 = vld [vmem:[%s1 + $0x18] sm:$0xf]
    %v71 = vld [vmem:[%s1 + $0x1c] sm:$0xf]
    %v72 = vld [vmem:[%s1 + $0x20] sm:$0xf]
    %v73 = vld [vmem:[%s1 + $0x24] sm:$0xf]
    %v74 = vld [vmem:[%s1 + $0x28] sm:$0xf]
    %v75 = vld [vmem:[%s1 + $0x2c] sm:$0xf]
    %v76 = vld [vmem:[%s1 + $0x30] sm:$0xf]
    %v77 = vld [vmem:[%s1 + $0x34] sm:$0xf]
    %v78 = vld [vmem:[%s1 + $0x38] sm:$0xf]
    %v79 = vld [vmem:[%s1 + $0x3c] sm:$0xf]
    %v88 = vunpack.c.l.b16 %v56
    %v89 = vunpack.c.l.b16 %v57
    %v90 = vunpack.c.l.b16 %v58
    %v91 = vunpack.c.l.b16 %v59
    %v92 = vunpack.c.l.b16 %v60
    %v93 = vunpack.c.l.b16 %v61
    %v94 = vunpack.c.l.b16 %v62
    %v95 = vunpack.c.l.b16 %v63
    %v96 = vpack.c.b16 %v89, %v88
    %v97 = vpack.c.b16 %v91, %v90
    %v98 = vpack.c.b16 %v93, %v92
    %v99 = vpack.c.b16 %v95, %v94
    %v120 = vunpack.c.l.b16 %v64
    %v121 = vunpack.c.l.b16 %v65
    %v122 = vunpack.c.l.b16 %v66
    %v123 = vunpack.c.l.b16 %v67
    %v124 = vunpack.c.l.b16 %v68
    %v125 = vunpack.c.l.b16 %v69
    %v126 = vunpack.c.l.b16 %v70
    %v127 = vunpack.c.l.b16 %v71
    %v128 = vunpack.c.l.b16 %v72
    %v129 = vunpack.c.l.b16 %v73
    %v130 = vunpack.c.l.b16 %v74
    %v131 = vunpack.c.l.b16 %v75
    %v132 = vunpack.c.l.b16 %v76
    %v133 = vunpack.c.l.b16 %v77
    %v134 = vunpack.c.l.b16 %v78
    %v135 = vunpack.c.l.b16 %v79
    %v136 = vpack.c.b16 %v121, %v120
    %v137 = vpack.c.b16 %v123, %v122
    %v138 = vpack.c.b16 %v125, %v124
    %v139 = vpack.c.b16 %v127, %v126
    %v140 = vpack.c.b16 %v129, %v128
    %v141 = vpack.c.b16 %v131, %v130
    %v142 = vpack.c.b16 %v133, %v132
    %v143 = vpack.c.b16 %v135, %v134
    %152 = vmatprep.subr.bf16.mxu0 0
    %153 = vmatpush1.bf16.msra.mxu0 %v143
    %154 = vmatprep.subr.bf16.mxu0 0
    %155 = vmatpush1.bf16.msra.mxu0 %v142
    %156 = vmatprep.subr.bf16.mxu0 0
    %157 = vmatpush1.bf16.msra.mxu0 %v141
    %158 = vmatprep.subr.bf16.mxu0 0
    %159 = vmatpush1.bf16.msra.mxu0 %v140
    %160 = vmatprep.subr.bf16.mxu0 0
    %161 = vmatpush1.bf16.msra.mxu0 %v139
    %162 = vmatprep.subr.bf16.mxu0 0
    %163 = vmatpush1.bf16.msra.mxu0 %v138
    %164 = vmatprep.subr.bf16.mxu0 0
    %165 = vmatpush1.bf16.msra.mxu0 %v137
    %166 = vmatprep.subr.bf16.mxu0 0
    %167 = vmatpush1.bf16.msra.mxu0 %v136
    %168 = vmatprep.subr.bf16.mxu0 0
    %169 = vmatpush2.bf16.msra.mxu0 0
    %170 = vmatprep.subr.bf16.mxu0 0
    %171 = vmatpush2.bf16.msra.mxu0 0
    %172 = vmatprep.subr.bf16.mxu0 0
    %173 = vmatpush2.bf16.msra.mxu0 0
    %174 = vmatprep.subr.bf16.mxu0 0
    %175 = vmatpush2.bf16.msra.mxu0 0
    %176 = vmatprep.subr.bf16.mxu0 0
    %177 = vmatpush2.bf16.msra.mxu0 0
    %178 = vmatprep.subr.bf16.mxu0 0
    %179 = vmatpush2.bf16.msra.mxu0 0
    %180 = vmatprep.subr.bf16.mxu0 0
    %181 = vmatpush2.bf16.msra.mxu0 0
    %182 = vmatprep.subr.bf16.mxu0 0
    %183 = vmatpush2.bf16.msra.mxu0 0
    %184 = vmatprep.mubr.bf16.mxu0 0
    %185 = vmatmul.mubr.bf16.gmra.mxu0 %v96
    %v186 = vpop.f32.mrf.mxu0
    %v187 = vadd.f32 0.0, %v186
    %v188 = vpop.f32.mrf.mxu0
    %v189 = vpop.f32.mrf.mxu0
    %v190 = vadd.f32 0.0, %v189
    %v191 = vpop.f32.mrf.mxu0
    %192 = vmatprep.mubr.bf16.mxu0 0
    %193 = vmatmul.mubr.bf16.gmra.mxu0 %v97
    %v194 = vpop.f32.mrf.mxu0
    %v195 = vadd.f32 0.0, %v194
    %v196 = vpop.f32.mrf.mxu0
    %v197 = vpop.f32.mrf.mxu0
    %v198 = vadd.f32 0.0, %v197
    %v199 = vpop.f32.mrf.mxu0
    %200 = vmatprep.mubr.bf16.mxu0 0
    %201 = vmatmul.mubr.bf16.gmra.mxu0 %v98
    %v202 = vpop.f32.mrf.mxu0
    %v203 = vadd.f32 0.0, %v202
    %v204 = vpop.f32.mrf.mxu0
    %v205 = vpop.f32.mrf.mxu0
    %v206 = vadd.f32 0.0, %v205
    %v207 = vpop.f32.mrf.mxu0
    %208 = vmatprep.mubr.bf16.mxu0 0
    %209 = vmatmul.mubr.bf16.gmra.mxu0 %v99
    %v210 = vpop.f32.mrf.mxu0
    %v211 = vadd.f32 0.0, %v210
    %v212 = vpop.f32.mrf.mxu0
    %v213 = vpop.f32.mrf.mxu0
    %v214 = vadd.f32 0.0, %v213
    %v215 = vpop.f32.mrf.mxu0
    %216 = vdwg.mxu0
    %v217 = vadd.f32 %v48, %v187
    %v218 = vadd.f32 %v49, %v190
    %v219 = vadd.f32 %v50, %v195
    %v220 = vadd.f32 %v51, %v198
    %v221 = vadd.f32 %v52, %v203
    %v222 = vadd.f32 %v53, %v206
    %v223 = vadd.f32 %v54, %v211
    %v224 = vadd.f32 %v55, %v214
    %225 = vst [vmem:[#allocation2] sm:$0xff] %v217
    %226 = vst [vmem:[#allocation2 + $0x8] sm:$0xff] %v218
    %227 = vst [vmem:[#allocation2 + $0x10] sm:$0xff] %v219
    %228 = vst [vmem:[#allocation2 + $0x18] sm:$0xff] %v220
    %229 = vst [vmem:[#allocation2 + $0x20] sm:$0xff] %v221
    %230 = vst [vmem:[#allocation2 + $0x28] sm:$0xff] %v222
    %231 = vst [vmem:[#allocation2 + $0x30] sm:$0xff] %v223
    %232 = vst [vmem:[#allocation2 + $0x38] sm:$0xff] %v224
    // Predicated region
    $region30: #{tpu_custom_call.1} parent=1 // pred_check
      %p233 = pneg %p36
    $region31: #{tpu_custom_call.1} parent=1 // pred_check_branch
      %235 = sbr.rel (%p233) target = $region33
    $region32: #{tpu_custom_call.1} parent=1 // pred_region
      %v236 = vld [vmem:[#allocation2] sm:$0xff]
      %v237 = vld [vmem:[#allocation2 + $0x8] sm:$0xff]
      %v238 = vld [vmem:[#allocation2 + $0x10] sm:$0xff]
      %v239 = vld [vmem:[#allocation2 + $0x18] sm:$0xff]
      %v240 = vld [vmem:[#allocation2 + $0x20] sm:$0xff]
      %v241 = vld [vmem:[#allocation2 + $0x28] sm:$0xff]
      %v242 = vld [vmem:[#allocation2 + $0x30] sm:$0xff]
      %v243 = vld [vmem:[#allocation2 + $0x38] sm:$0xff]
      %v244 = vld [vmem:[%s2] sm:$0xff]
      %v245 = vld [vmem:[%s2 + $0x8] sm:$0xff]
      %v246 = vld [vmem:[%s2 + $0x10] sm:$0xff]
      %v247 = vld [vmem:[%s2 + $0x18] sm:$0xff]
      %v248 = vld [vmem:[%s2 + $0x20] sm:$0xff]
      %v249 = vld [vmem:[%s2 + $0x28] sm:$0xff]
      %v250 = vld [vmem:[%s2 + $0x30] sm:$0xff]
      %v251 = vld [vmem:[%s2 + $0x38] sm:$0xff]
      %253 = vset.pattern.permute.xlu0 0
      %254 = vperm.xlu0 %253, %v244
      %v255 = vpop.permute.xlu0 %254
      %258 = vset.pattern.permute.xlu0 0
      %259 = vperm.xlu0 %258, %v245
      %v260 = vpop.permute.xlu0 %259
      %263 = vset.pattern.permute.xlu0 0
      %264 = vperm.xlu0 %263, %v246
      %v265 = vpop.permute.xlu0 %264
      %268 = vset.pattern.permute.xlu0 0
      %269 = vperm.xlu0 %268, %v247
      %v270 = vpop.permute.xlu0 %269
      %273 = vset.pattern.permute.xlu0 0
      %274 = vperm.xlu0 %273, %v248
      %v275 = vpop.permute.xlu0 %274
      %278 = vset.pattern.permute.xlu0 0
      %279 = vperm.xlu0 %278, %v249
      %v280 = vpop.permute.xlu0 %279
      %283 = vset.pattern.permute.xlu0 0
      %284 = vperm.xlu0 %283, %v250
      %v285 = vpop.permute.xlu0 %284
      %288 = vset.pattern.permute.xlu0 0
      %289 = vperm.xlu0 %288, %v251
      %v290 = vpop.permute.xlu0 %289
      %v292 = vadd.f32 %v236, %v255
      %v293 = vadd.f32 %v237, %v260
      %v294 = vadd.f32 %v238, %v265
      %v295 = vadd.f32 %v239, %v270
      %v296 = vadd.f32 %v240, %v275
      %v297 = vadd.f32 %v241, %v280
      %v298 = vadd.f32 %v242, %v285
      %v299 = vadd.f32 %v243, %v290
      %v300 = vmax.f32 %v292, 0.0
      %v301 = vmax.f32 %v293, 0.0
      %v302 = vmax.f32 %v294, 0.0
      %v303 = vmax.f32 %v295, 0.0
      %v304 = vmax.f32 %v296, 0.0
      %v305 = vmax.f32 %v297, 0.0
      %v306 = vmax.f32 %v298, 0.0
      %v307 = vmax.f32 %v299, 0.0
      %v308 = vld [vmem:[#allocation3] sm:$0xff]
      %v309 = vld [vmem:[#allocation3 + $0x8] sm:$0xff]
      %v310 = vld [vmem:[#allocation3 + $0x10] sm:$0xff]
      %v311 = vld [vmem:[#allocation3 + $0x18] sm:$0xff]
      %v312 = vld [vmem:[%s4] sm:$0xff]
      %v313 = vld [vmem:[%s4 + $0x8] sm:$0xff]
      %v314 = vld [vmem:[%s4 + $0x10] sm:$0xff]
      %v315 = vld [vmem:[%s4 + $0x18] sm:$0xff]
      %317 = vset.pattern.permute.xlu0 0
      %318 = vperm.xlu0 %317, %v312
      %v319 = vpop.permute.xlu0 %318
      %322 = vset.pattern.permute.xlu0 0
      %323 = vperm.xlu0 %322, %v313
      %v324 = vpop.permute.xlu0 %323
      %327 = vset.pattern.permute.xlu0 0
      %328 = vperm.xlu0 %327, %v314
      %v329 = vpop.permute.xlu0 %328
      %332 = vset.pattern.permute.xlu0 0
      %333 = vperm.xlu0 %332, %v315
      %v334 = vpop.permute.xlu0 %333
      %vm336 = vcmask 523264
      %v338 = vsel %vm336, %v308, 0
      %v341 = vsel %vm336, %v309, 0
      %v344 = vsel %vm336, %v310, 0
      %v347 = vsel %vm336, %v311, 0
      %349 = vmatprep.subr.mxu0 0.0
      %350 = vmatpush1.msra.mxu0 0.0
      %351 = vmatprep.subr.mxu0 0.0
      %352 = vmatpush1.msra.mxu0 0.0
      %353 = vmatprep.subr.mxu0 0.0
      %354 = vmatpush1.msra.mxu0 0.0
      %355 = vmatprep.subr.mxu0 0.0
      %356 = vmatpush1.msra.mxu0 0.0
      %357 = vmatprep.subr.mxu0 0.0
      %358 = vmatpush1.msra.mxu0 0.0
      %359 = vmatprep.subr.mxu0 0.0
      %360 = vmatpush1.msra.mxu0 0.0
      %361 = vmatprep.subr.mxu0 0.0
      %362 = vmatpush1.msra.mxu0 0.0
      %363 = vmatprep.subr.mxu0 0.0
      %364 = vmatpush1.msra.mxu0 0.0
      %365 = vmatprep.subr.mxu0 0.0
      %366 = vmatpush1.msra.mxu0 %v307
      %367 = vmatprep.subr.mxu0 0.0
      %368 = vmatpush1.msra.mxu0 %v306
      %369 = vmatprep.subr.mxu0 0.0
      %370 = vmatpush1.msra.mxu0 %v305
      %371 = vmatprep.subr.mxu0 0.0
      %372 = vmatpush1.msra.mxu0 %v304
      %373 = vmatprep.subr.mxu0 0.0
      %374 = vmatpush1.msra.mxu0 %v303
      %375 = vmatprep.subr.mxu0 0.0
      %376 = vmatpush1.msra.mxu0 %v302
      %377 = vmatprep.subr.mxu0 0.0
      %378 = vmatpush1.msra.mxu0 %v301
      %379 = vmatprep.subr.mxu0 0.0
      %380 = vmatpush1.msra.mxu0 %v300
      %381 = vmatprep.subr.mxu0 0.0
      %382 = vmatpush2.msra.mxu0 0.0
      %383 = vmatprep.subr.mxu0 0.0
      %384 = vmatpush2.msra.mxu0 0.0
      %385 = vmatprep.subr.mxu0 0.0
      %386 = vmatpush2.msra.mxu0 0.0
      %387 = vmatprep.subr.mxu0 0.0
      %388 = vmatpush2.msra.mxu0 0.0
      %389 = vmatprep.subr.mxu0 0.0
      %390 = vmatpush2.msra.mxu0 0.0
      %391 = vmatprep.subr.mxu0 0.0
      %392 = vmatpush2.msra.mxu0 0.0
      %393 = vmatprep.subr.mxu0 0.0
      %394 = vmatpush2.msra.mxu0 0.0
      %395 = vmatprep.subr.mxu0 0.0
      %396 = vmatpush2.msra.mxu0 0.0
      %397 = vmatprep.subr.mxu0 0.0
      %398 = vmatpush2.msra.mxu0 0.0
      %399 = vmatprep.subr.mxu0 0.0
      %400 = vmatpush2.msra.mxu0 0.0
      %401 = vmatprep.subr.mxu0 0.0
      %402 = vmatpush2.msra.mxu0 0.0
      %403 = vmatprep.subr.mxu0 0.0
      %404 = vmatpush2.msra.mxu0 0.0
      %405 = vmatprep.subr.mxu0 0.0
      %406 = vmatpush2.msra.mxu0 0.0
      %407 = vmatprep.subr.mxu0 0.0
      %408 = vmatpush2.msra.mxu0 0.0
      %409 = vmatprep.subr.mxu0 0.0
      %410 = vmatpush2.msra.mxu0 0.0
      %411 = vmatprep.subr.mxu0 0.0
      %412 = vmatpush2.msra.mxu0 0.0
      %413 = vmatprep.mubr.f32.mxu0 0.0
      %414 = vmatmul.mubr.f32.gmra.mxu0 %v338
      %v415 = vpop.f32.mrf.mxu0
      %v416 = vadd.f32 %v319, %v415
      %v417 = vpop.f32.mrf.mxu0
      %418 = vmatprep.mubr.f32.mxu0 0.0
      %419 = vmatmul.mubr.f32.gmra.mxu0 %v341
      %v420 = vpop.f32.mrf.mxu0
      %v421 = vadd.f32 %v324, %v420
      %v422 = vpop.f32.mrf.mxu0
      %423 = vmatprep.mubr.f32.mxu0 0.0
      %424 = vmatmul.mubr.f32.gmra.mxu0 %v344
      %v425 = vpop.f32.mrf.mxu0
      %v426 = vadd.f32 %v329, %v425
      %v427 = vpop.f32.mrf.mxu0
      %428 = vmatprep.mubr.f32.mxu0 0.0
      %429 = vmatmul.mubr.f32.gmra.mxu0 %v347
      %v430 = vpop.f32.mrf.mxu0
      %v431 = vadd.f32 %v334, %v430
      %v432 = vpop.f32.mrf.mxu0
      %433 = vdwg.mxu0
      %v434 = vmax.f32 %v416, 0.0
      %v435 = vmax.f32 %v421, 0.0
      %v436 = vmax.f32 %v426, 0.0
      %v437 = vmax.f32 %v431, 0.0
      %v438 = vpack.c.bf16 %v435, %v434
      %v439 = vpack.c.bf16 %v437, %v436
      %v442 = vunpack.c.l.b16 %v438
      %v443 = vunpack.c.h.b16 %v438
      %v444 = vunpack.c.l.b16 %v439
      %v445 = vunpack.c.h.b16 %v439
      %v446 = vpack.c.b16 %v442, %v442
      %v447 = vpack.c.b16 %v443, %v443
      %v448 = vpack.c.b16 %v444, %v444
      %v449 = vpack.c.b16 %v445, %v445
      %454 = vst [vmem:[#allocation6] sm:$0xf] %v446
      %455 = vst [vmem:[#allocation6 + $0x4] sm:$0xf] %v447
      %456 = vst [vmem:[#allocation6 + $0x8] sm:$0xf] %v448
      %457 = vst [vmem:[#allocation6 + $0xc] sm:$0xf] %v449
    $region33: #{tpu_custom_call.1} parent=1 // pred_fallthru
      _
    // Predicated region
    $region34: #{tpu_custom_call.1} parent=1 // pred_check
      _
    $region35: #{tpu_custom_call.1} parent=1 // pred_check_branch
      %459 = sbr.rel (0) target = $region37
    $region36: #{tpu_custom_call.1} parent=1 // pred_region
      %s461 = ssub.s32 256, 256
      %462 = vsyncadd [#allocation5], %s461
      %s463 = sshll.u32 [#allocation6], 4
      %s464 = int_to_ptr.vmem [resolvable:$true] %s463
      %469 = dma.vmem_to_hbm [thread:$0]  %s464, 256, %s5, [#allocation5], 64, 64, 4
    $region37: #{tpu_custom_call.1} parent=1 // pred_fallthru
      _
    // Predicated region
    $region38: #{tpu_custom_call.1} parent=1 // pred_check
      _
    $region39: #{tpu_custom_call.1} parent=1 // pred_check_branch
      %471 = sbr.rel (0) target = $region41
    $region40: #{tpu_custom_call.1} parent=1 // pred_region
      %472 = dma.done [#allocation5], 256
    $region41: #{tpu_custom_call.1} parent=1 // pred_fallthru
      _
    %473 = vsyncpa [#allocation4], 1
    %474 = vsyncpa [#allocation5], 1

</llo_original>
